<compile_context>
chip_gen: v7x
topology: tpu7x:2x2x1
jax: 0.10.0
libtpu: 0.0.40
codegen_flags: <defaults>
</compile_context>

<pallas_src>
import jax
import jax.numpy as jnp
from jax.experimental import pallas as pl
from jax.experimental.pallas import tpu as pltpu

_EPS = 1e-6
# Set to jnp.bfloat16 on v6e/v7x for production channel counts (bf16-native MXU,
# halves weight/activation matmul bytes).  f32 keeps tight parity with PyTorch.
_MATMUL_DTYPE = jnp.float32
_VMEM_TILE_BUDGET = 8 * 1024 * 1024   # conservative: double-buffered tiles fit v7x


# ----------------------------------------------------------------------------- #
# Kernels
# ----------------------------------------------------------------------------- #
def _ln_lanes(x, gamma, beta):
    """LayerNorm over the last (channel/lane) dim; rsqrt goes to the EUP slot."""
    mu = jnp.mean(x, axis=-1, keepdims=True)
    var = jnp.mean(jnp.square(x - mu), axis=-1, keepdims=True)
    return (x - mu) * jax.lax.rsqrt(var + _EPS) * gamma + beta


def _down_branch(dp_ref, wd_ref, p):
    """Conv2d(k=2,s=2)-as-matmul + channels-first LN on a (HT, Wo, 4*Cin) tile."""
    ht, wo, kc = dp_ref.shape
    patches = dp_ref[...].reshape(ht * wo, kc).astype(wd_ref.dtype)
    y = jnp.dot(patches, wd_ref[...], preferred_element_type=jnp.float32) + p[0]
    return _ln_lanes(y, p[1], p[2])                          # (HT*Wo, C) f32


def _up_branch(u_ref, wu_ref, p, ht):
    """Linear + channels-last LN at coarse height, then nearest-2x H replication."""
    hu, wo, cn = u_ref.shape
    c = wu_ref.shape[-1]
    uu = u_ref[...].reshape(hu * wo, cn).astype(wu_ref.dtype)
    z = jnp.dot(uu, wu_ref[...], preferred_element_type=jnp.float32) + p[0]
    z = _ln_lanes(z, p[1], p[2])                             # (HU*Wo, C)
    # Fine rows 2i and 2i+1 share coarse row i -> replicate along an outer dim.
    z = jnp.broadcast_to(z.reshape(hu, 1, wo, c), (hu, 2, wo, c))
    return z.reshape(ht * wo, c)


def _fusion_kernel(dp_ref, u_ref, wd_ref, wu_ref, pp_ref, o_ref):
    ht, wo, _ = dp_ref.shape
    c = o_ref.shape[-1]
    p = pp_ref[...]                                          # (6, C)
    y = _down_branch(dp_ref, wd_ref, p[0:3])
    z = _up_branch(u_ref, wu_ref, p[3:6], ht)
    o_ref[...] = (y + z).reshape(ht, wo, c).astype(o_ref.dtype)


def _down_kernel(dp_ref, wd_ref, pp_ref, o_ref):
    ht, wo, _ = dp_ref.shape
    c = o_ref.shape[-1]
    y = _down_branch(dp_ref, wd_ref, pp_ref[...])
    o_ref[...] = y.reshape(ht, wo, c).astype(o_ref.dtype)


def _up_identity_kernel(cd_ref, u_ref, wu_ref, pp_ref, o_ref):
    ht, wo, c = cd_ref.shape
    z = _up_branch(u_ref, wu_ref, pp_ref[...], ht)
    out = cd_ref[...].reshape(ht * wo, c).astype(jnp.float32) + z
    o_ref[...] = out.reshape(ht, wo, c).astype(o_ref.dtype)


# ----------------------------------------------------------------------------- #
# Glue / wrappers
# ----------------------------------------------------------------------------- #
def _conv_patches(x):
    """NCHW -> (N, Ho, Wo, 4*Cin) patches ((kh, kw, ci) order), ONE XLA transpose."""
    n, cin, h, w = x.shape
    ho, wo = h // 2, w // 2
    x = x.reshape(n, cin, ho, 2, wo, 2)                      # free reshape
    x = jnp.transpose(x, (0, 2, 4, 3, 5, 1))                 # (n, ho, wo, kh, kw, ci)
    return x.reshape(n, ho, wo, 4 * cin)                     # free reshape


def _down_weights(p):
    c = p["conv_b"].shape[0]
    wd = jnp.transpose(p["conv_w"], (2, 3, 1, 0)).reshape(-1, c)   # (4*Cin, C)
    pdown = jnp.stack([p["conv_b"], p["ln_down_w"], p["ln_down_b"]]).astype(jnp.float32)
    return wd.astype(_MATMUL_DTYPE), pdown


def _up_weights(p):
    wu = jnp.transpose(p["lin_w"])                                  # (Cnext, C)
    pup = jnp.stack([p["lin_b"], p["ln_up_w"], p["ln_up_b"]]).astype(jnp.float32)
    return wu.astype(_MATMUL_DTYPE), pup


def _pick_ht(ho, n_batch, row_bytes, need_even):
    """Largest row-tile dividing ho that fits the VMEM budget (>=2 grid steps)."""
    step = 2 if need_even else 1
    cands = [t for t in range(step, ho + 1, step) if ho % t == 0]
    if not cands:
        return ho
    fitting = [t for t in cands if t * row_bytes <= _VMEM_TILE_BUDGET] or [cands[0]]
    ht = max(fitting)
    # keep at least 2 independent grid steps so both v7x TensorCores get work
    while n_batch * (ho // ht) < 2:
        smaller = [t for t in fitting if t < ht]
        if not smaller:
            break
        ht = max(smaller)
    return ht


def _rep(*_):
    return (0, 0)


def _down_plus_up(c_down, c_up, p):
    n, cin, h, w = c_down.shape
    ho, wo, kc = h // 2, w // 2, 4 * cin
    c = p["conv_b"].shape[0]
    cn = c_up.shape[1]

    dp = _conv_patches(c_down)                               # (N, Ho, Wo, 4*Cin)
    wd, pdown = _down_weights(p)
    wu, pup = _up_weights(p)
    pp = jnp.concatenate([pdown, pup], axis=0)               # (6, C)

    # Up input: NHWC at coarse height; width 2x done once on the small array
    # (Linear+LN are per-pixel, so replication commutes exactly).
    u = jnp.transpose(c_up, (0, 2, 3, 1))                    # (N, Hu, Wu, Cn)
    u = jnp.repeat(u, 2, axis=2)                             # (N, Hu, Wo, Cn)

    row_bytes = 8 * wo * (kc + c + cn)                       # double-buffered f32
    ht = _pick_ht(ho, n, row_bytes, need_even=True)

    out = pl.pallas_call(
        _fusion_kernel,
        out_shape=jax.ShapeDtypeStruct((n, ho, wo, c), jnp.float32),
        grid_spec=pltpu.PrefetchScalarGridSpec(
            num_scalar_prefetch=0,
            grid=(n, ho // ht),
            in_specs=[
                pl.BlockSpec((None, ht, wo, kc), lambda ni, hi: (ni, hi, 0, 0)),
                pl.BlockSpec((None, ht // 2, wo, cn), lambda ni, hi: (ni, hi, 0, 0)),
                pl.BlockSpec((kc, c), _rep),
                pl.BlockSpec((cn, c), _rep),
                pl.BlockSpec((6, c), _rep),
            ],
            out_specs=pl.BlockSpec((None, ht, wo, c), lambda ni, hi: (ni, hi, 0, 0)),
        ),
        compiler_params=pltpu.CompilerParams(
            dimension_semantics=("parallel", "parallel")),
    )(dp, u, wd, wu, pp)
    return jnp.transpose(out, (0, 3, 1, 2))                  # back to NCHW


def _down_only(c_down, p):
    n, cin, h, w = c_down.shape
    ho, wo, kc = h // 2, w // 2, 4 * cin
    c = p["conv_b"].shape[0]

    dp = _conv_patches(c_down)
    wd, pdown = _down_weights(p)
    row_bytes = 8 * wo * (kc + c)
    ht = _pick_ht(ho, n, row_bytes, need_even=False)

    out = pl.pallas_call(
        _down_kernel,
        out_shape=jax.ShapeDtypeStruct((n, ho, wo, c), jnp.float32),
        grid_spec=pltpu.PrefetchScalarGridSpec(
            num_scalar_prefetch=0,
            grid=(n, ho // ht),
            in_specs=[
                pl.BlockSpec((None, ht, wo, kc), lambda ni, hi: (ni, hi, 0, 0)),
                pl.BlockSpec((kc, c), _rep),
                pl.BlockSpec((3, c), _rep),
            ],
            out_specs=pl.BlockSpec((None, ht, wo, c), lambda ni, hi: (ni, hi, 0, 0)),
        ),
        compiler_params=pltpu.CompilerParams(
            dimension_semantics=("parallel", "parallel")),
    )(dp, wd, pdown)
    return jnp.transpose(out, (0, 3, 1, 2))


def _up_plus_identity(c_down, c_up, p):
    """level == 0, not first column: up(c_up) + c_down (down == Identity)."""
    n, c, h, w = c_down.shape
    cn = c_up.shape[1]

    cd = jnp.transpose(c_down, (0, 2, 3, 1))                 # (N, H, W, C)
    u = jnp.transpose(c_up, (0, 2, 3, 1))                    # (N, H/2, W/2, Cn)
    u = jnp.repeat(u, 2, axis=2)                             # (N, H/2, W, Cn)
    wu, pup = _up_weights(p)

    row_bytes = 8 * w * (2 * c + cn)
    ht = _pick_ht(h, n, row_bytes, need_even=True)

    out = pl.pallas_call(
        _up_identity_kernel,
        out_shape=jax.ShapeDtypeStruct((n, h, w, c), jnp.float32),
        grid_spec=pltpu.PrefetchScalarGridSpec(
            num_scalar_prefetch=0,
            grid=(n, h // ht),
            in_specs=[
                pl.BlockSpec((None, ht, w, c), lambda ni, hi: (ni, hi, 0, 0)),
                pl.BlockSpec((None, ht // 2, w, cn), lambda ni, hi: (ni, hi, 0, 0)),
                pl.BlockSpec((cn, c), _rep),
                pl.BlockSpec((3, c), _rep),
            ],
            out_specs=pl.BlockSpec((None, ht, w, c), lambda ni, hi: (ni, hi, 0, 0)),
        ),
        compiler_params=pltpu.CompilerParams(
            dimension_semantics=("parallel", "parallel")),
    )(cd, u, wu, pup)
    return jnp.transpose(out, (0, 3, 1, 2))


def fusion_pallas(c_down, c_up, params, level, first_col):
    """Mirrors Fusion.forward (NCHW in, NCHW out)."""
    if first_col:
        return _down_only(c_down, params) if level in (1, 2, 3) else c_down
    if level == 3:
        return _down_only(c_down, params)
    if level == 0:
        return _up_plus_identity(c_down, c_up, params)       # down == Identity
    return _down_plus_up(c_down, c_up, params)


# ----------------------------------------------------------------------------- #
# Plain-JAX reference (correctness check) and parameter init
# ----------------------------------------------------------------------------- #
def fusion_reference(c_down, c_up, p, level, first_col):
    def down(x):
        if level == 0:
            return x
        y = jax.lax.conv_general_dilated(
            x, p["conv_w"], window_strides=(2, 2), padding="VALID",
            dimension_numbers=("NCHW", "OIHW", "NCHW"))
        y = y + p["conv_b"][None, :, None, None]
        mu = y.mean(axis=1, keepdims=True)
        var = ((y - mu) ** 2).mean(axis=1, keepdims=True)
        y = (y - mu) / jnp.sqrt(var + _EPS)
        return (p["ln_down_w"][None, :, None, None] * y
                + p["ln_down_b"][None, :, None, None])

    def up(x):
        u = jnp.transpose(x, (0, 2, 3, 1))
        z = u @ p["lin_w"].T + p["lin_b"]
        mu = z.mean(-1, keepdims=True)
        var = ((z - mu) ** 2).mean(-1, keepdims=True)
        z = (z - mu) / jnp.sqrt(var + _EPS) * p["ln_up_w"] + p["ln_up_b"]
        z = jnp.transpose(z, (0, 3, 1, 2))
        return jnp.repeat(jnp.repeat(z, 2, axis=2), 2, axis=3)

    if first_col or level == 3:
        return down(c_down)
    return up(c_up) + down(c_down)


def init_params(key, c_in, c_out, c_next):
    ks = jax.random.split(key, 8)
    f32 = jnp.float32
    return {
        "conv_w":    0.1 * jax.random.normal(ks[0], (c_out, c_in, 2, 2), f32),
        "conv_b":    0.1 * jax.random.normal(ks[1], (c_out,), f32),
        "ln_down_w": 1.0 + 0.1 * jax.random.normal(ks[2], (c_out,), f32),
        "ln_down_b": 0.1 * jax.random.normal(ks[3], (c_out,), f32),
        "lin_w":     0.1 * jax.random.normal(ks[4], (c_out, c_next), f32),
        "lin_b":     0.1 * jax.random.normal(ks[5], (c_out,), f32),
        "ln_up_w":   1.0 + 0.1 * jax.random.normal(ks[6], (c_out,), f32),
        "ln_up_b":   0.1 * jax.random.normal(ks[7], (c_out,), f32),
    }


# ----------------------------------------------------------------------------- #
if __name__ == "__main__":
    channels = [4, 8, 16, 32]
    N, H, W = 2, 16, 16
    key = jax.random.PRNGKey(0)
    k_down, k_up, k_params, k_d0, k_u0, k_p0, k_d3, k_p3 = jax.random.split(key, 8)

    def check(out, ref, tag):
        assert out.shape == ref.shape, (tag, out.shape, ref.shape)
        err = float(jnp.max(jnp.abs(out - ref)))
        assert jnp.allclose(out, ref, atol=2e-2, rtol=2e-2), (tag, err)

    # ---- level 1, not first column: up(c_up) + down(c_down) ----
    level = 1
    c_in, c_mid, c_next = channels[level - 1], channels[level], channels[level + 1]
    c_down = jax.random.normal(k_down, (N, c_in, H, W), jnp.float32)
    c_up = jax.random.normal(k_up, (N, c_next, H // 4, W // 4), jnp.float32)
    params = init_params(k_params, c_in, c_mid, c_next)
    out = jax.block_until_ready(fusion_pallas(c_down, c_up, params, level, False))
    check(out, fusion_reference(c_down, c_up, params, level, False), "level1")
    assert out.shape == (N, c_mid, H // 2, W // 2)

    # ---- level 1, first column: down only ----
    out_fc = jax.block_until_ready(fusion_pallas(c_down, c_up, params, level, True))
    check(out_fc, fusion_reference(c_down, c_up, params, level, True), "level1_fc")

    # ---- level 0, not first column: up(c_up) + identity ----
    c0, c1 = channels[0], channels[1]
    d0 = jax.random.normal(k_d0, (N, c0, H, W), jnp.float32)
    u0 = jax.random.normal(k_u0, (N, c1, H // 2, W // 2), jnp.float32)
    p0 = init_params(k_p0, c0, c0, c1)
    out0 = jax.block_until_ready(fusion_pallas(d0, u0, p0, 0, False))
    check(out0, fusion_reference(d0, u0, p0, 0, False), "level0")

    # ---- level 3, not first column: down only (up is Identity) ----
    c2, c3 = channels[2], channels[3]
    d3 = jax.random.normal(k_d3, (N, c2, H // 4, W // 4), jnp.float32)
    p3 = init_params(k_p3, c2, c3, c3)
    out3 = jax.block_until_ready(fusion_pallas(d3, None, p3, 3, False))
    check(out3, fusion_reference(d3, None, p3, 3, False), "level3")

    print("KERNEL_OK")
</pallas_src>

<mosaic_0001>
module attributes {stable_mosaic.version = 11 : i64} {
  func.func @_fusion_kernel(%arg0: i32, %arg1: i32, %arg2: memref<1x8x8x16xf32, #tpu.memory_space<vmem>>, %arg3: memref<1x4x8x16xf32, #tpu.memory_space<vmem>>, %arg4: memref<16x8xf32, #tpu.memory_space<vmem>>, %arg5: memref<16x8xf32, #tpu.memory_space<vmem>>, %arg6: memref<6x8xf32, #tpu.memory_space<vmem>>, %arg7: memref<1x8x8x8xf32, #tpu.memory_space<vmem>>) attributes {dimension_semantics = [#tpu.dimension_semantics<parallel>, #tpu.dimension_semantics<parallel>], iteration_bounds = array<i64: 2, 1>, scalar_prefetch = 0 : i64, scratch_operands = 0 : i64, tpu.core_type = #tpu.core_type<tc>, window_params = [{transform_indices = @transform_0, window_bounds = array<i64: 1, 8, 8, 16>}, {transform_indices = @transform_1, window_bounds = array<i64: 1, 4, 8, 16>}, {pipeline_mode = #tpu.pipeline_mode<synchronous>, transform_indices = @transform_2, window_bounds = array<i64: 16, 8>}, {pipeline_mode = #tpu.pipeline_mode<synchronous>, transform_indices = @transform_3, window_bounds = array<i64: 16, 8>}, {pipeline_mode = #tpu.pipeline_mode<synchronous>, transform_indices = @transform_4, window_bounds = array<i64: 6, 8>}, {transform_indices = @transform_5, window_bounds = array<i64: 1, 8, 8, 8>}]} {
    %c0 = arith.constant 0 : index
    %c0_0 = arith.constant 0 : index
    %0 = vector.load %arg6[%c0, %c0_0] : memref<6x8xf32, #tpu.memory_space<vmem>>, vector<6x8xf32>
    %1 = vector.extract_strided_slice %0 {offsets = [0, 0], sizes = [3, 8], strides = [1, 1]} : vector<6x8xf32> to vector<3x8xf32>
    %c0_1 = arith.constant 0 : index
    %c0_2 = arith.constant 0 : index
    %c0_3 = arith.constant 0 : index
    %c0_4 = arith.constant 0 : index
    %2 = vector.load %arg2[%c0_1, %c0_2, %c0_3, %c0_4] : memref<1x8x8x16xf32, #tpu.memory_space<vmem>>, vector<1x8x8x16xf32>
    %3 = vector.shape_cast %2 : vector<1x8x8x16xf32> to vector<8x8x16xf32>
    %4 = vector.shape_cast %3 : vector<8x8x16xf32> to vector<64x16xf32>
    %c0_5 = arith.constant 0 : index
    %c0_6 = arith.constant 0 : index
    %5 = vector.load %arg4[%c0_5, %c0_6] : memref<16x8xf32, #tpu.memory_space<vmem>>, vector<16x8xf32>
    %cst = arith.constant dense<0.000000e+00> : vector<64x8xf32>
    %6 = tpu.matmul %4, %5, %cst {dimension_numbers = #tpu.dot_dimension_numbers<[1], [0], [0], [1], [0, 0, 1, 1], [], []>} : vector<64x16xf32>, vector<16x8xf32>, vector<64x8xf32> -> vector<64x8xf32>
    %7 = vector.extract_strided_slice %1 {offsets = [0, 0], sizes = [1, 8], strides = [1, 1]} : vector<3x8xf32> to vector<1x8xf32>
    %8 = vector.shape_cast %7 : vector<1x8xf32> to vector<8xf32>
    %9 = vector.shape_cast %8 : vector<8xf32> to vector<1x8xf32>
    %10 = vector.broadcast %9 : vector<1x8xf32> to vector<64x8xf32>
    %11 = arith.addf %6, %10 : vector<64x8xf32>
    %12 = vector.extract_strided_slice %1 {offsets = [1, 0], sizes = [1, 8], strides = [1, 1]} : vector<3x8xf32> to vector<1x8xf32>
    %13 = vector.shape_cast %12 : vector<1x8xf32> to vector<8xf32>
    %14 = vector.extract_strided_slice %1 {offsets = [2, 0], sizes = [1, 8], strides = [1, 1]} : vector<3x8xf32> to vector<1x8xf32>
    %15 = vector.shape_cast %14 : vector<1x8xf32> to vector<8xf32>
    %cst_7 = arith.constant dense<0.000000e+00> : vector<64xf32>
    %16 = vector.multi_reduction <add>, %11, %cst_7 [1] : vector<64x8xf32> to vector<64xf32>
    %17 = vector.shape_cast %16 : vector<64xf32> to vector<64x1xf32>
    %cst_8 = arith.constant 8.000000e+00 : f32
    %18 = vector.broadcast %cst_8 : f32 to vector<64x1xf32>
    %19 = arith.divf %17, %18 : vector<64x1xf32>
    %20 = vector.broadcast %19 : vector<64x1xf32> to vector<64x8xf32>
    %21 = arith.subf %11, %20 : vector<64x8xf32>
    %22 = arith.mulf %21, %21 : vector<64x8xf32>
    %cst_9 = arith.constant dense<0.000000e+00> : vector<64xf32>
    %23 = vector.multi_reduction <add>, %22, %cst_9 [1] : vector<64x8xf32> to vector<64xf32>
    %24 = vector.shape_cast %23 : vector<64xf32> to vector<64x1xf32>
    %cst_10 = arith.constant 8.000000e+00 : f32
    %25 = vector.broadcast %cst_10 : f32 to vector<64x1xf32>
    %26 = arith.divf %24, %25 : vector<64x1xf32>
    %27 = vector.broadcast %19 : vector<64x1xf32> to vector<64x8xf32>
    %28 = arith.subf %11, %27 : vector<64x8xf32>
    %cst_11 = arith.constant 9.99999997E-7 : f32
    %29 = vector.broadcast %cst_11 : f32 to vector<64x1xf32>
    %30 = arith.addf %26, %29 : vector<64x1xf32>
    %31 = math.rsqrt %30 : vector<64x1xf32>
    %32 = vector.broadcast %31 : vector<64x1xf32> to vector<64x8xf32>
    %33 = arith.mulf %28, %32 : vector<64x8xf32>
    %34 = vector.shape_cast %13 : vector<8xf32> to vector<1x8xf32>
    %35 = vector.broadcast %34 : vector<1x8xf32> to vector<64x8xf32>
    %36 = arith.mulf %33, %35 : vector<64x8xf32>
    %37 = vector.shape_cast %15 : vector<8xf32> to vector<1x8xf32>
    %38 = vector.broadcast %37 : vector<1x8xf32> to vector<64x8xf32>
    %39 = arith.addf %36, %38 : vector<64x8xf32>
    %40 = vector.extract_strided_slice %0 {offsets = [3, 0], sizes = [3, 8], strides = [1, 1]} : vector<6x8xf32> to vector<3x8xf32>
    %c0_12 = arith.constant 0 : index
    %c0_13 = arith.constant 0 : index
    %c0_14 = arith.constant 0 : index
    %c0_15 = arith.constant 0 : index
    %41 = vector.load %arg3[%c0_12, %c0_13, %c0_14, %c0_15] : memref<1x4x8x16xf32, #tpu.memory_space<vmem>>, vector<1x4x8x16xf32>
    %42 = vector.shape_cast %41 : vector<1x4x8x16xf32> to vector<4x8x16xf32>
    %43 = vector.shape_cast %42 : vector<4x8x16xf32> to vector<32x16xf32>
    %c0_16 = arith.constant 0 : index
    %c0_17 = arith.constant 0 : index
    %44 = vector.load %arg5[%c0_16, %c0_17] : memref<16x8xf32, #tpu.memory_space<vmem>>, vector<16x8xf32>
    %cst_18 = arith.constant dense<0.000000e+00> : vector<32x8xf32>
    %45 = tpu.matmul %43, %44, %cst_18 {dimension_numbers = #tpu.dot_dimension_numbers<[1], [0], [0], [1], [0, 0, 1, 1], [], []>} : vector<32x16xf32>, vector<16x8xf32>, vector<32x8xf32> -> vector<32x8xf32>
    %46 = vector.extract_strided_slice %40 {offsets = [0, 0], sizes = [1, 8], strides = [1, 1]} : vector<3x8xf32> to vector<1x8xf32>
    %47 = vector.shape_cast %46 : vector<1x8xf32> to vector<8xf32>
    %48 = vector.shape_cast %47 : vector<8xf32> to vector<1x8xf32>
    %49 = vector.broadcast %48 : vector<1x8xf32> to vector<32x8xf32>
    %50 = arith.addf %45, %49 : vector<32x8xf32>
    %51 = vector.extract_strided_slice %40 {offsets = [1, 0], sizes = [1, 8], strides = [1, 1]} : vector<3x8xf32> to vector<1x8xf32>
    %52 = vector.shape_cast %51 : vector<1x8xf32> to vector<8xf32>
    %53 = vector.extract_strided_slice %40 {offsets = [2, 0], sizes = [1, 8], strides = [1, 1]} : vector<3x8xf32> to vector<1x8xf32>
    %54 = vector.shape_cast %53 : vector<1x8xf32> to vector<8xf32>
    %cst_19 = arith.constant dense<0.000000e+00> : vector<32xf32>
    %55 = vector.multi_reduction <add>, %50, %cst_19 [1] : vector<32x8xf32> to vector<32xf32>
    %56 = vector.shape_cast %55 : vector<32xf32> to vector<32x1xf32>
    %cst_20 = arith.constant 8.000000e+00 : f32
    %57 = vector.broadcast %cst_20 : f32 to vector<32x1xf32>
    %58 = arith.divf %56, %57 : vector<32x1xf32>
    %59 = vector.broadcast %58 : vector<32x1xf32> to vector<32x8xf32>
    %60 = arith.subf %50, %59 : vector<32x8xf32>
    %61 = arith.mulf %60, %60 : vector<32x8xf32>
    %cst_21 = arith.constant dense<0.000000e+00> : vector<32xf32>
    %62 = vector.multi_reduction <add>, %61, %cst_21 [1] : vector<32x8xf32> to vector<32xf32>
    %63 = vector.shape_cast %62 : vector<32xf32> to vector<32x1xf32>
    %cst_22 = arith.constant 8.000000e+00 : f32
    %64 = vector.broadcast %cst_22 : f32 to vector<32x1xf32>
    %65 = arith.divf %63, %64 : vector<32x1xf32>
    %66 = vector.broadcast %58 : vector<32x1xf32> to vector<32x8xf32>
    %67 = arith.subf %50, %66 : vector<32x8xf32>
    %cst_23 = arith.constant 9.99999997E-7 : f32
    %68 = vector.broadcast %cst_23 : f32 to vector<32x1xf32>
    %69 = arith.addf %65, %68 : vector<32x1xf32>
    %70 = math.rsqrt %69 : vector<32x1xf32>
    %71 = vector.broadcast %70 : vector<32x1xf32> to vector<32x8xf32>
    %72 = arith.mulf %67, %71 : vector<32x8xf32>
    %73 = vector.shape_cast %52 : vector<8xf32> to vector<1x8xf32>
    %74 = vector.broadcast %73 : vector<1x8xf32> to vector<32x8xf32>
    %75 = arith.mulf %72, %74 : vector<32x8xf32>
    %76 = vector.shape_cast %54 : vector<8xf32> to vector<1x8xf32>
    %77 = vector.broadcast %76 : vector<1x8xf32> to vector<32x8xf32>
    %78 = arith.addf %75, %77 : vector<32x8xf32>
    %79 = vector.shape_cast %78 : vector<32x8xf32> to vector<4x1x8x8xf32>
    %80 = vector.shape_cast %79 : vector<4x1x8x8xf32> to vector<4x1x8x8xf32>
    %81 = vector.broadcast %80 : vector<4x1x8x8xf32> to vector<4x2x8x8xf32>
    %82 = vector.shape_cast %81 : vector<4x2x8x8xf32> to vector<64x8xf32>
    %83 = arith.addf %39, %82 : vector<64x8xf32>
    %84 = vector.shape_cast %83 : vector<64x8xf32> to vector<8x8x8xf32>
    %c0_24 = arith.constant 0 : index
    %c0_25 = arith.constant 0 : index
    %c0_26 = arith.constant 0 : index
    %c0_27 = arith.constant 0 : index
    %85 = vector.load %arg7[%c0_24, %c0_25, %c0_26, %c0_27] : memref<1x8x8x8xf32, #tpu.memory_space<vmem>>, vector<1x8x8x8xf32>
    %86 = vector.shape_cast %85 : vector<1x8x8x8xf32> to vector<8x8x8xf32>
    %87 = vector.shape_cast %84 : vector<8x8x8xf32> to vector<1x8x8x8xf32>
    tpu.vector_store %arg7[%c0_24, %c0_25, %c0_26, %c0_27], %87 {strides = array<i32>} : memref<1x8x8x8xf32, #tpu.memory_space<vmem>>, vector<1x8x8x8xf32>,
    return
  }
  func.func @transform_0(%arg0: i32, %arg1: i32) -> (i32, i32, i32, i32) {
    %c0_i32 = arith.constant 0 : i32
    %c0_i32_0 = arith.constant 0 : i32
    %c0_i32_1 = arith.constant 0 : i32
    return %arg0, %arg1, %c0_i32, %c0_i32_0 : i32, i32, i32, i32
  }
  func.func @transform_1(%arg0: i32, %arg1: i32) -> (i32, i32, i32, i32) {
    %c0_i32 = arith.constant 0 : i32
    %c0_i32_0 = arith.constant 0 : i32
    %c0_i32_1 = arith.constant 0 : i32
    return %arg0, %arg1, %c0_i32, %c0_i32_0 : i32, i32, i32, i32
  }
  func.func @transform_2(%arg0: i32, %arg1: i32) -> (i32, i32) {
    %c0_i32 = arith.constant 0 : i32
    %c0_i32_0 = arith.constant 0 : i32
    %c0_i32_1 = arith.constant 0 : i32
    return %c0_i32, %c0_i32_0 : i32, i32
  }
  func.func @transform_3(%arg0: i32, %arg1: i32) -> (i32, i32) {
    %c0_i32 = arith.constant 0 : i32
    %c0_i32_0 = arith.constant 0 : i32
    %c0_i32_1 = arith.constant 0 : i32
    return %c0_i32, %c0_i32_0 : i32, i32
  }
  func.func @transform_4(%arg0: i32, %arg1: i32) -> (i32, i32) {
    %c0_i32 = arith.constant 0 : i32
    %c0_i32_0 = arith.constant 0 : i32
    %c0_i32_1 = arith.constant 0 : i32
    return %c0_i32, %c0_i32_0 : i32, i32
  }
  func.func @transform_5(%arg0: i32, %arg1: i32) -> (i32, i32, i32, i32) {
    %c0_i32 = arith.constant 0 : i32
    %c0_i32_0 = arith.constant 0 : i32
    %c0_i32_1 = arith.constant 0 : i32
    return %arg0, %arg1, %c0_i32, %c0_i32_0 : i32, i32, i32, i32
  }
}

</mosaic_0001>

<llo_original>
// kernel: tpu_custom_call.1
$region0: #{tpu_custom_call.1}
  #allocation0 [shape = 'u32[]', space=smem, size = 0x4, offset = 0x4, fixed_abs, tag = 'smem constant byte address 0x4 - core index']
  #allocation1 [shape = 'u32[144,128]{1,0:T(1,128)}', space=vmem, size = 0x12000, scoped, tag = 'internal scratch']
  %s0 = inlined_call_operand.hbm [shape: f32[2,8,8,16], index: 0, kind: input, shape index: {}]
  %s1 = inlined_call_operand.hbm [shape: f32[2,4,8,16], index: 1, kind: input, shape index: {}]
  %s2 = inlined_call_operand.vmem [shape: f32[16,8], index: 2, kind: input, shape index: {}]
  %s3 = inlined_call_operand.vmem [shape: f32[16,8], index: 3, kind: input, shape index: {}]
  %s4 = inlined_call_operand.vmem [shape: f32[6,8], index: 4, kind: input, shape index: {}]
  %s5 = inlined_call_operand.hbm [shape: f32[2,8,8,8], index: 5, kind: output, shape index: {}]
  %s6 = sld [smem:[#allocation0]]
  $region61: #{tpu_custom_call.1} parent=0
    _
  %s8 = ssub.s32 1, %s6
  %s9 = scalar_select 0, %s8, %s6
  $region1: #{tpu_custom_call.1} parent=0
    #allocation2 [shape = 'u8[65536]{0}', space=vmem, size = 0x10000, scoped, tag = 'input window, operand 0']
    #allocation3 [shape = 's32[2]{0}', space=sflag, size = 0x8, scoped, tag = 'scoped memory for tpu_custom_call.1']
    #allocation4 [shape = 's32[2]{0}', space=sflag, size = 0x8, scoped, tag = 'scoped memory for tpu_custom_call.1']
    #allocation5 [shape = 'u8[32768]{0}', space=vmem, size = 0x8000, scoped, tag = 'input window, operand 1']
    #allocation6 [shape = 's32[2]{0}', space=sflag, size = 0x8, scoped, tag = 'scoped memory for tpu_custom_call.1']
    #allocation7 [shape = 'u8[65536]{0}', space=vmem, size = 0x10000, scoped, tag = 'output window, operand 0']
    %10 = vsyncpa [#allocation3], 0
    %s11 = scalar_lea.sflag [#allocation3], 1
    %12 = vsyncpa %s11, 0
    %13 = vsyncpa [#allocation6], 0
    %s14 = scalar_lea.sflag [#allocation6], 1
    %15 = vsyncpa %s14, 0
    %16 = vsyncpa [#allocation4], 0
    %s17 = scalar_lea.sflag [#allocation4], 1
    %18 = vsyncpa %s17, 0
    loop: start=0, step=1, limit=4
    $region2: #{tpu_custom_call.1} parent=1 // loop_pre_header
      _
    $region3: #{tpu_custom_call.1} parent=1 // loop_header
      %s20 = sphi 0, %s24
      %p21 = scmp.ge.s32.totalorder %s20, 4
      %s27 = sphi 0, %s39
      %s28 = sphi 0, %s35
      %s29 = sphi 0, %s27
      %s30 = sphi 0, %s28
      %s31 = sphi 0, %s29
      %s32 = sphi 0, %s30
      %s44 = sphi 0, %s46
      %s47 = sphi 0, %s44
      %s48 = sphi 0, %s47
      %s64 = sphi 0, %s48
      %s72 = sphi 0, %s74
      %s75 = sphi 0, %s72
      %s76 = sphi 0, %s75
      %s92 = sphi 0, %s76
      %s96 = sphi 0, %s96
      %s98 = sphi 0, %s96
      %s99 = sphi 0, %s98
      %s113 = sphi 0, %s99
      %s117 = sphi 0, %s117
      %s119 = sphi 0, %s117
      %s120 = sphi 0, %s119
      %s134 = sphi 0, %s120
      %s138 = sphi 0, %s138
      %s140 = sphi 0, %s138
      %s141 = sphi 0, %s140
      %s155 = sphi 0, %s141
      %s163 = sphi 0, %s165
      %s166 = sphi 0, %s163
      %s167 = sphi 0, %s166
      %s183 = sphi 0, %s167
    $region4: #{tpu_custom_call.1} parent=1 // loop_header_branch
      %23 = sbr.rel (%p21) target = $region8
    $region5: #{tpu_custom_call.1} parent=1 // loop_body
      %s25 = ssub.s32 %s20, 1
      %s26 = ssub.s32 %s20, 2
      %s33 = sadd.s32 1, %s28
      %p34 = scmp.ge.s32.totalorder %s33, 1
      %s35 = scalar_select %p34, 0, %s33
      %s36 = sadd.s32 1, %s27
      %s37 = scalar_select %p34, %s36, %s27
      %p38 = scmp.ge.s32.totalorder %s37, 2
      %s39 = scalar_select %p38, 0, %s37
      %s40 = ssub.s32 %s27, %s39
      %s41 = ssub.s32 %s28, %s35
      %s42 = sor.u32 %s40, %s41
      %p43 = scmp.eq.s32.totalorder %s42, 0
      %s45 = sadd.s32 %s44, 1
      %s46 = scalar_select %p43, %s44, %s45
      %p49 = pneg %p43
      %p50 = scmp.eq.s32.totalorder %s20, 1
      %p51 = por %p49, %p50
      %p52 = scmp.ne.s32.totalorder %s44, %s47
      %p53 = scmp.eq.s32.totalorder %s20, 0
      %p54 = por %p52, %p53
      %p55 = scmp.ne.s32.totalorder %s44, %s47
      %p56 = scmp.eq.s32.totalorder %s25, 1
      %p57 = por %p55, %p56
      %p58 = scmp.ne.s32.totalorder %s47, %s48
      %p59 = scmp.eq.s32.totalorder %s25, 0
      %p60 = por %p58, %p59
      %p61 = scmp.ne.s32.totalorder %s47, %s48
      %p62 = scmp.eq.s32.totalorder %s26, 1
      %p63 = por %p61, %p62
      %p65 = scmp.ne.s32.totalorder %s48, %s64
      %p66 = scmp.eq.s32.totalorder %s26, 0
      %p67 = por %p65, %p66
      %s68 = ssub.s32 %s27, %s39
      %s69 = ssub.s32 %s28, %s35
      %s70 = sor.u32 %s68, %s69
      %p71 = scmp.eq.s32.totalorder %s70, 0
      %s73 = sadd.s32 %s72, 1
      %s74 = scalar_select %p71, %s72, %s73
      %p77 = pneg %p71
      %p78 = scmp.eq.s32.totalorder %s20, 1
      %p79 = por %p77, %p78
      %p80 = scmp.ne.s32.totalorder %s72, %s75
      %p81 = scmp.eq.s32.totalorder %s20, 0
      %p82 = por %p80, %p81
      %p83 = scmp.ne.s32.totalorder %s72, %s75
      %p84 = scmp.eq.s32.totalorder %s25, 1
      %p85 = por %p83, %p84
      %p86 = scmp.ne.s32.totalorder %s75, %s76
      %p87 = scmp.eq.s32.totalorder %s25, 0
      %p88 = por %p86, %p87
      %p89 = scmp.ne.s32.totalorder %s75, %s76
      %p90 = scmp.eq.s32.totalorder %s26, 1
      %p91 = por %p89, %p90
      %p93 = scmp.ne.s32.totalorder %s76, %s92
      %p94 = scmp.eq.s32.totalorder %s26, 0
      %p95 = por %p93, %p94
      %s97 = sadd.s32 %s96, 1
      %p100 = scmp.eq.s32.totalorder %s20, 1
      %p101 = scmp.ne.s32.totalorder %s96, %s98
      %p102 = scmp.eq.s32.totalorder %s20, 0
      %p103 = por %p101, %p102
      %p104 = scmp.ne.s32.totalorder %s96, %s98
      %p105 = scmp.eq.s32.totalorder %s25, 1
      %p106 = por %p104, %p105
      %p107 = scmp.ne.s32.totalorder %s98, %s99
      %p108 = scmp.eq.s32.totalorder %s25, 0
      %p109 = por %p107, %p108
      %p110 = scmp.ne.s32.totalorder %s98, %s99
      %p111 = scmp.eq.s32.totalorder %s26, 1
      %p112 = por %p110, %p111
      %p114 = scmp.ne.s32.totalorder %s99, %s113
      %p115 = scmp.eq.s32.totalorder %s26, 0
      %p116 = por %p114, %p115
      %s118 = sadd.s32 %s117, 1
      %p121 = scmp.eq.s32.totalorder %s20, 1
      %p122 = scmp.ne.s32.totalorder %s117, %s119
      %p123 = scmp.eq.s32.totalorder %s20, 0
      %p124 = por %p122, %p123
      %p125 = scmp.ne.s32.totalorder %s117, %s119
      %p126 = scmp.eq.s32.totalorder %s25, 1
      %p127 = por %p125, %p126
      %p128 = scmp.ne.s32.totalorder %s119, %s120
      %p129 = scmp.eq.s32.totalorder %s25, 0
      %p130 = por %p128, %p129
      %p131 = scmp.ne.s32.totalorder %s119, %s120
      %p132 = scmp.eq.s32.totalorder %s26, 1
      %p133 = por %p131, %p132
      %p135 = scmp.ne.s32.totalorder %s120, %s134
      %p136 = scmp.eq.s32.totalorder %s26, 0
      %p137 = por %p135, %p136
      %s139 = sadd.s32 %s138, 1
      %p142 = scmp.eq.s32.totalorder %s20, 1
      %p143 = scmp.ne.s32.totalorder %s138, %s140
      %p144 = scmp.eq.s32.totalorder %s20, 0
      %p145 = por %p143, %p144
      %p146 = scmp.ne.s32.totalorder %s138, %s140
      %p147 = scmp.eq.s32.totalorder %s25, 1
      %p148 = por %p146, %p147
      %p149 = scmp.ne.s32.totalorder %s140, %s141
      %p150 = scmp.eq.s32.totalorder %s25, 0
      %p151 = por %p149, %p150
      %p152 = scmp.ne.s32.totalorder %s140, %s141
      %p153 = scmp.eq.s32.totalorder %s26, 1
      %p154 = por %p152, %p153
      %p156 = scmp.ne.s32.totalorder %s141, %s155
      %p157 = scmp.eq.s32.totalorder %s26, 0
      %p158 = por %p156, %p157
      %s159 = ssub.s32 %s27, %s39
      %s160 = ssub.s32 %s28, %s35
      %s161 = sor.u32 %s159, %s160
      %p162 = scmp.eq.s32.totalorder %s161, 0
      %s164 = sadd.s32 %s163, 1
      %s165 = scalar_select %p162, %s163, %s164
      %p168 = pneg %p162
      %p169 = scmp.eq.s32.totalorder %s20, 1
      %p170 = por %p168, %p169
      %p171 = scmp.ne.s32.totalorder %s163, %s166
      %p172 = scmp.eq.s32.totalorder %s20, 0
      %p173 = por %p171, %p172
      %p174 = scmp.ne.s32.totalorder %s163, %s166
      %p175 = scmp.eq.s32.totalorder %s25, 1
      %p176 = por %p174, %p175
      %p177 = scmp.ne.s32.totalorder %s166, %s167
      %p178 = scmp.eq.s32.totalorder %s25, 0
      %p179 = por %p177, %p178
      %p180 = scmp.ne.s32.totalorder %s166, %s167
      %p181 = scmp.eq.s32.totalorder %s26, 1
      %p182 = por %p180, %p181
      %p184 = scmp.ne.s32.totalorder %s167, %s183
      %p185 = scmp.eq.s32.totalorder %s26, 0
      %p186 = por %p184, %p185
      %p187 = scmp.le.s32.totalorder 1, %s20
      %p188 = scmp.lt.s32.totalorder %s20, 3
      %p189 = pnand %p187, %p188
      %p190 = pneg %p189
      // Predicated region
      $region9: #{tpu_custom_call.1} parent=5 // pred_check
        _
      $region10: #{tpu_custom_call.1} parent=5 // pred_check_branch
        %192 = sbr.rel (%p189) target = $region12
      $region11: #{tpu_custom_call.1} parent=5 // pred_region
        %s193 = ssub.s32 %s20, 1
        // Predicated region
        $region13: #{tpu_custom_call.1} parent=11 // pred_check
          %p194 = pneg %p109
        $region14: #{tpu_custom_call.1} parent=11 // pred_check_branch
          %196 = sbr.rel (%p194) target = $region16
        $region15: #{tpu_custom_call.1} parent=11 // pred_region
          _
        $region16: #{tpu_custom_call.1} parent=11 // pred_fallthru
          _
        // Predicated region
        $region17: #{tpu_custom_call.1} parent=11 // pred_check
          %p197 = pneg %p130
        $region18: #{tpu_custom_call.1} parent=11 // pred_check_branch
          %199 = sbr.rel (%p197) target = $region20
        $region19: #{tpu_custom_call.1} parent=11 // pred_region
          _
        $region20: #{tpu_custom_call.1} parent=11 // pred_fallthru
          _
        // Predicated region
        $region21: #{tpu_custom_call.1} parent=11 // pred_check
          %p200 = pneg %p151
        $region22: #{tpu_custom_call.1} parent=11 // pred_check_branch
          %202 = sbr.rel (%p200) target = $region24
        $region23: #{tpu_custom_call.1} parent=11 // pred_region
          _
        $region24: #{tpu_custom_call.1} parent=11 // pred_fallthru
          _
      $region12: #{tpu_custom_call.1} parent=5 // pred_fallthru
        _
      %p203 = scmp.lt.s32.totalorder %s20, 2
      // Predicated region
      $region25: #{tpu_custom_call.1} parent=5 // pred_check
        %p204 = pneg %p203
      $region26: #{tpu_custom_call.1} parent=5 // pred_check_branch
        %206 = sbr.rel (%p204) target = $region28
      $region27: #{tpu_custom_call.1} parent=5 // pred_region
        // Predicated region
        $region29: #{tpu_custom_call.1} parent=27 // pred_check
          %p207 = pneg %p54
        $region30: #{tpu_custom_call.1} parent=27 // pred_check_branch
          %209 = sbr.rel (%p207) target = $region32
        $region31: #{tpu_custom_call.1} parent=27 // pred_region
          %s210 = sand.u32 %s44, 1
          %s211 = scalar_lea.sflag [#allocation3], %s210
          %s212 = sand.u32 %s44, 1
          %s213 = smul.addr %s212, 64
          %s214 = scalar_lea.vmem [#allocation2], %s213
          %s215 = smul.u32 8, %s28
          %s217 = ssub.s32 1024, 1024
          %218 = vsyncadd %s211, %s217
          %s219 = smul.addr %s27, 8
          %s220 = sadd.s32 %s215, %s219
          %s221 = smul.addr %s220, 128
          %s222 = scalar_lea.hbm %s0, %s221
          %s223 = sshll.u32 %s214, 4
          %s224 = int_to_ptr.vmem [resolvable:$true] %s223
          %229 = dma.hbm_to_vmem [thread:$0]  %s222, 1024, %s224, %s211, 128, 128, 8
        $region32: #{tpu_custom_call.1} parent=27 // pred_fallthru
          _
        // Predicated region
        $region33: #{tpu_custom_call.1} parent=27 // pred_check
          %p230 = pneg %p82
        $region34: #{tpu_custom_call.1} parent=27 // pred_check_branch
          %232 = sbr.rel (%p230) target = $region36
        $region35: #{tpu_custom_call.1} parent=27 // pred_region
          %s233 = sand.u32 %s72, 1
          %s234 = scalar_lea.sflag [#allocation6], %s233
          %s235 = sand.u32 %s72, 1
          %s236 = smul.addr %s235, 32
          %s237 = scalar_lea.vmem [#allocation5], %s236
          %s238 = smul.u32 4, %s28
          %s240 = ssub.s32 512, 512
          %241 = vsyncadd %s234, %s240
          %s242 = smul.addr %s27, 4
          %s243 = sadd.s32 %s238, %s242
          %s244 = smul.addr %s243, 128
          %s245 = scalar_lea.hbm %s1, %s244
          %s246 = sshll.u32 %s237, 4
          %s247 = int_to_ptr.vmem [resolvable:$true] %s246
          %252 = dma.hbm_to_vmem [thread:$0]  %s245, 512, %s247, %s234, 128, 128, 8
        $region36: #{tpu_custom_call.1} parent=27 // pred_fallthru
          _
      $region28: #{tpu_custom_call.1} parent=5 // pred_fallthru
        _
      %p253 = scmp.le.s32.totalorder 1, %s20
      %p254 = scmp.lt.s32.totalorder %s20, 3
      %p255 = pnand %p253, %p254
      %p256 = pneg %p255
      // Predicated region
      $region37: #{tpu_custom_call.1} parent=5 // pred_check
        _
      $region38: #{tpu_custom_call.1} parent=5 // pred_check_branch
        %258 = sbr.rel (%p255) target = $region40
      $region39: #{tpu_custom_call.1} parent=5 // pred_region
        %s259 = ssub.s32 %s20, 1
        %s260 = sand.u32 %s47, 1
        %s261 = scalar_lea.sflag [#allocation3], %s260
        %s262 = sand.u32 %s47, 1
        %s263 = smul.addr %s262, 64
        %s264 = scalar_lea.vmem [#allocation2], %s263
        // Predicated region
        $region41: #{tpu_custom_call.1} parent=39 // pred_check
          %p265 = pneg %p60
        $region42: #{tpu_custom_call.1} parent=39 // pred_check_branch
          %267 = sbr.rel (%p265) target = $region44
        $region43: #{tpu_custom_call.1} parent=39 // pred_region
          %268 = dma.done %s261, 1024
        $region44: #{tpu_custom_call.1} parent=39 // pred_fallthru
          _
        %s269 = sand.u32 %s75, 1
        %s270 = scalar_lea.sflag [#allocation6], %s269
        %s271 = sand.u32 %s75, 1
        %s272 = smul.addr %s271, 32
        %s273 = scalar_lea.vmem [#allocation5], %s272
        // Predicated region
        $region45: #{tpu_custom_call.1} parent=39 // pred_check
          %p274 = pneg %p88
        $region46: #{tpu_custom_call.1} parent=39 // pred_check_branch
          %276 = sbr.rel (%p274) target = $region48
        $region47: #{tpu_custom_call.1} parent=39 // pred_region
          %277 = dma.done %s270, 512
        $region48: #{tpu_custom_call.1} parent=39 // pred_fallthru
          _
        %s278 = sand.u32 %s47, 1
        %s279 = scalar_lea.sflag [#allocation3], %s278
        %s280 = sand.u32 %s47, 1
        %s281 = smul.addr %s280, 64
        %s282 = scalar_lea.vmem [#allocation2], %s281
        %p283 = pneg %p60
        %p284 = pneg %p57
        %s285 = sand.u32 %s75, 1
        %s286 = scalar_lea.sflag [#allocation6], %s285
        %s287 = sand.u32 %s75, 1
        %s288 = smul.addr %s287, 32
        %s289 = scalar_lea.vmem [#allocation5], %s288
        %p290 = pneg %p88
        %p291 = pneg %p85
        %p292 = pneg %p109
        %p293 = pneg %p106
        %p294 = pneg %p130
        %p295 = pneg %p127
        %p296 = pneg %p151
        %p297 = pneg %p148
        %p298 = pneg %p179
        %p299 = pneg %p176
        %s300 = sand.u32 %s166, 1
        %s301 = scalar_lea.sflag [#allocation4], %s300
        %s302 = sand.u32 %s166, 1
        %s303 = smul.addr %s302, 64
        %s304 = scalar_lea.vmem [#allocation7], %s303
        %s305 = smul.u32 8, %s30
        %s306 = smul.u32 4, %s30
        %s307 = smul.u32 8, %s30
        %v308 = vld [vmem:[%s4] sm:$0x3f]
        %v309 = vld [vmem:[%s264] sm:$0xff]
        %v310 = vld [vmem:[%s264 + $0x8] sm:$0xff]
        %v311 = vld [vmem:[%s264 + $0x10] sm:$0xff]
        %v312 = vld [vmem:[%s264 + $0x18] sm:$0xff]
        %v313 = vld [vmem:[%s264 + $0x20] sm:$0xff]
        %v314 = vld [vmem:[%s264 + $0x28] sm:$0xff]
        %v315 = vld [vmem:[%s264 + $0x30] sm:$0xff]
        %v316 = vld [vmem:[%s264 + $0x38] sm:$0xff]
        %v317 = vld [vmem:[%s2] sm:$0xff]
        %v318 = vld [vmem:[%s2 + $0x8] sm:$0xff]
        %v319 = vlaneseq
        %v320 = vshrl.u32 %v319, 7
        %v321 = vsub.s32 0, %v320
        %v322 = vrot.slane %v308, %v321
        %vm323 = vcmask 130048
        %v325 = vsel %vm323, %v309, 0
        %v328 = vsel %vm323, %v310, 0
        %v331 = vsel %vm323, %v311, 0
        %v334 = vsel %vm323, %v312, 0
        %v337 = vsel %vm323, %v313, 0
        %v340 = vsel %vm323, %v314, 0
        %v343 = vsel %vm323, %v315, 0
        %v346 = vsel %vm323, %v316, 0
        %348 = vmatprep.subr.mxu0 0.0
        %349 = vmatpush1.msra.mxu0 %v317
        %350 = vmatprep.subr.mxu0 0.0
        %351 = vmatpush1.msra.mxu0 %v318
        %352 = vmatprep.subr.mxu0 0.0
        %353 = vmatpush1.msra.mxu0 0.0
        %354 = vmatprep.subr.mxu0 0.0
        %355 = vmatpush1.msra.mxu0 0.0
        %356 = vmatprep.subr.mxu0 0.0
        %357 = vmatpush1.msra.mxu0 0.0
        %358 = vmatprep.subr.mxu0 0.0
        %359 = vmatpush1.msra.mxu0 0.0
        %360 = vmatprep.subr.mxu0 0.0
        %361 = vmatpush1.msra.mxu0 0.0
        %362 = vmatprep.subr.mxu0 0.0
        %363 = vmatpush1.msra.mxu0 0.0
        %364 = vmatprep.subr.mxu0 0.0
        %365 = vmatpush1.msra.mxu0 0.0
        %366 = vmatprep.subr.mxu0 0.0
        %367 = vmatpush1.msra.mxu0 0.0
        %368 = vmatprep.subr.mxu0 0.0
        %369 = vmatpush1.msra.mxu0 0.0
        %370 = vmatprep.subr.mxu0 0.0
        %371 = vmatpush1.msra.mxu0 0.0
        %372 = vmatprep.subr.mxu0 0.0
        %373 = vmatpush1.msra.mxu0 0.0
        %374 = vmatprep.subr.mxu0 0.0
        %375 = vmatpush1.msra.mxu0 0.0
        %376 = vmatprep.subr.mxu0 0.0
        %377 = vmatpush1.msra.mxu0 0.0
        %378 = vmatprep.subr.mxu0 0.0
        %379 = vmatpush1.msra.mxu0 0.0
        %380 = vmatprep.subr.mxu0 0.0
        %381 = vmatpush1.msra.mxu0 0.0
        %382 = vmatprep.subr.mxu0 0.0
        %383 = vmatpush1.msra.mxu0 0.0
        %384 = vmatprep.subr.mxu0 0.0
        %385 = vmatpush1.msra.mxu0 0.0
        %386 = vmatprep.subr.mxu0 0.0
        %387 = vmatpush1.msra.mxu0 0.0
        %388 = vmatprep.subr.mxu0 0.0
        %389 = vmatpush1.msra.mxu0 0.0
        %390 = vmatprep.subr.mxu0 0.0
        %391 = vmatpush1.msra.mxu0 0.0
        %392 = vmatprep.subr.mxu0 0.0
        %393 = vmatpush1.msra.mxu0 0.0
        %394 = vmatprep.subr.mxu0 0.0
        %395 = vmatpush1.msra.mxu0 0.0
        %396 = vmatprep.subr.mxu0 0.0
        %397 = vmatpush1.msra.mxu0 0.0
        %398 = vmatprep.subr.mxu0 0.0
        %399 = vmatpush1.msra.mxu0 0.0
        %400 = vmatprep.subr.mxu0 0.0
        %401 = vmatpush1.msra.mxu0 0.0
        %402 = vmatprep.subr.mxu0 0.0
        %403 = vmatpush1.msra.mxu0 0.0
        %404 = vmatprep.subr.mxu0 0.0
        %405 = vmatpush1.msra.mxu0 0.0
        %406 = vmatprep.subr.mxu0 0.0
        %407 = vmatpush1.msra.mxu0 0.0
        %408 = vmatprep.subr.mxu0 0.0
        %409 = vmatpush1.msra.mxu0 0.0
        %410 = vmatprep.subr.mxu0 0.0
        %411 = vmatpush1.msra.mxu0 0.0
        %412 = vmatprep.mubr.f32.mxu0 0.0
        %413 = vmatmul.mubr.f32.gmra.mrb[0].mxu0 %v325
        %v414 = vpop.f32.mrb[0].mxu0
        %v415 = vadd.f32 %v322, %v414
        %v416 = vpop.f32.mrb[0].mxu0
        %417 = vmatprep.mubr.f32.mxu0 0.0
        %418 = vmatmul.mubr.f32.gmra.mrb[0].mxu0 %v328
        %v419 = vpop.f32.mrb[0].mxu0
        %v420 = vadd.f32 %v322, %v419
        %v421 = vpop.f32.mrb[0].mxu0
        %422 = vmatprep.mubr.f32.mxu0 0.0
        %423 = vmatmul.mubr.f32.gmra.mrb[0].mxu0 %v331
        %v424 = vpop.f32.mrb[0].mxu0
        %v425 = vadd.f32 %v322, %v424
        %v426 = vpop.f32.mrb[0].mxu0
        %427 = vmatprep.mubr.f32.mxu0 0.0
        %428 = vmatmul.mubr.f32.gmra.mrb[0].mxu0 %v334
        %v429 = vpop.f32.mrb[0].mxu0
        %v430 = vadd.f32 %v322, %v429
        %v431 = vpop.f32.mrb[0].mxu0
        %432 = vmatprep.mubr.f32.mxu0 0.0
        %433 = vmatmul.mubr.f32.gmra.mrb[0].mxu0 %v337
        %v434 = vpop.f32.mrb[0].mxu0
        %v435 = vadd.f32 %v322, %v434
        %v436 = vpop.f32.mrb[0].mxu0
        %437 = vmatprep.mubr.f32.mxu0 0.0
        %438 = vmatmul.mubr.f32.gmra.mrb[0].mxu0 %v340
        %v439 = vpop.f32.mrb[0].mxu0
        %v440 = vadd.f32 %v322, %v439
        %v441 = vpop.f32.mrb[0].mxu0
        %442 = vmatprep.mubr.f32.mxu0 0.0
        %443 = vmatmul.mubr.f32.gmra.mrb[0].mxu0 %v343
        %v444 = vpop.f32.mrb[0].mxu0
        %v445 = vadd.f32 %v322, %v444
        %v446 = vpop.f32.mrb[0].mxu0
        %447 = vmatprep.mubr.f32.mxu0 0.0
        %448 = vmatmul.mubr.f32.gmra.mrb[0].mxu0 %v346
        %v449 = vpop.f32.mrb[0].mxu0
        %v450 = vadd.f32 %v322, %v449
        %v451 = vpop.f32.mrb[0].mxu0
        %452 = vdwg.mxu0
        %vm453 = vcmask 64512
        %v454 = vsel %vm453, %v415, 0.0
        %455 = vadd.xlane.f32.xlu0 %v454
        %v456 = vpop.xlane.xlu0 %455
        %v457 = vsel %vm453, %v420, 0.0
        %458 = vadd.xlane.f32.xlu0 %v457
        %v459 = vpop.xlane.xlu0 %458
        %v460 = vsel %vm453, %v425, 0.0
        %461 = vadd.xlane.f32.xlu0 %v460
        %v462 = vpop.xlane.xlu0 %461
        %v463 = vsel %vm453, %v430, 0.0
        %464 = vadd.xlane.f32.xlu0 %v463
        %v465 = vpop.xlane.xlu0 %464
        %v466 = vsel %vm453, %v435, 0.0
        %467 = vadd.xlane.f32.xlu0 %v466
        %v468 = vpop.xlane.xlu0 %467
        %v469 = vsel %vm453, %v440, 0.0
        %470 = vadd.xlane.f32.xlu0 %v469
        %v471 = vpop.xlane.xlu0 %470
        %v472 = vsel %vm453, %v445, 0.0
        %473 = vadd.xlane.f32.xlu0 %v472
        %v474 = vpop.xlane.xlu0 %473
        %v475 = vsel %vm453, %v450, 0.0
        %476 = vadd.xlane.f32.xlu0 %v475
        %v477 = vpop.xlane.xlu0 %476
        %v478 = vrcp.pop 8.0
        %v479 = vmul.f32 %v456, %v478
        %v480 = vmul.f32 %v459, %v478
        %v481 = vmul.f32 %v462, %v478
        %v482 = vmul.f32 %v465, %v478
        %v483 = vmul.f32 %v468, %v478
        %v484 = vmul.f32 %v471, %v478
        %v485 = vmul.f32 %v474, %v478
        %v486 = vmul.f32 %v477, %v478
        %v487 = vsub.f32 %v415, %v479
        %v488 = vsub.f32 %v420, %v480
        %v489 = vsub.f32 %v425, %v481
        %v490 = vsub.f32 %v430, %v482
        %v491 = vsub.f32 %v435, %v483
        %v492 = vsub.f32 %v440, %v484
        %v493 = vsub.f32 %v445, %v485
        %v494 = vsub.f32 %v450, %v486
        %v495 = vmul.f32 %v487, %v487
        %v496 = vmul.f32 %v488, %v488
        %v497 = vmul.f32 %v489, %v489
        %v498 = vmul.f32 %v490, %v490
        %v499 = vmul.f32 %v491, %v491
        %v500 = vmul.f32 %v492, %v492
        %v501 = vmul.f32 %v493, %v493
        %v502 = vmul.f32 %v494, %v494
        %v503 = vsel %vm453, %v495, 0.0
        %504 = vadd.xlane.f32.xlu0 %v503
        %v505 = vpop.xlane.xlu0 %504
        %v506 = vsel %vm453, %v496, 0.0
        %507 = vadd.xlane.f32.xlu0 %v506
        %v508 = vpop.xlane.xlu0 %507
        %v509 = vsel %vm453, %v497, 0.0
        %510 = vadd.xlane.f32.xlu0 %v509
        %v511 = vpop.xlane.xlu0 %510
        %v512 = vsel %vm453, %v498, 0.0
        %513 = vadd.xlane.f32.xlu0 %v512
        %v514 = vpop.xlane.xlu0 %513
        %v515 = vsel %vm453, %v499, 0.0
        %516 = vadd.xlane.f32.xlu0 %v515
        %v517 = vpop.xlane.xlu0 %516
        %v518 = vsel %vm453, %v500, 0.0
        %519 = vadd.xlane.f32.xlu0 %v518
        %v520 = vpop.xlane.xlu0 %519
        %v521 = vsel %vm453, %v501, 0.0
        %522 = vadd.xlane.f32.xlu0 %v521
        %v523 = vpop.xlane.xlu0 %522
        %v524 = vsel %vm453, %v502, 0.0
        %525 = vadd.xlane.f32.xlu0 %v524
        %v526 = vpop.xlane.xlu0 %525
        %v527 = vmul.f32 %v505, %v478
        %v528 = vmul.f32 %v508, %v478
        %v529 = vmul.f32 %v511, %v478
        %v530 = vmul.f32 %v514, %v478
        %v531 = vmul.f32 %v517, %v478
        %v532 = vmul.f32 %v520, %v478
        %v533 = vmul.f32 %v523, %v478
        %v534 = vmul.f32 %v526, %v478
        %v535 = vadd.f32 %v527, 1e-06
        %v536 = vadd.f32 %v528, 1e-06
        %v537 = vadd.f32 %v529, 1e-06
        %v538 = vadd.f32 %v530, 1e-06
        %v539 = vadd.f32 %v531, 1e-06
        %v540 = vadd.f32 %v532, 1e-06
        %v541 = vadd.f32 %v533, 1e-06
        %v542 = vadd.f32 %v534, 1e-06
        %v543 = vrsqrt.pop %v535
        %v544 = vrsqrt.pop %v536
        %v545 = vrsqrt.pop %v537
        %v546 = vrsqrt.pop %v538
        %v547 = vrsqrt.pop %v539
        %v548 = vrsqrt.pop %v540
        %v549 = vrsqrt.pop %v541
        %v550 = vrsqrt.pop %v542
        %v551 = vmul.f32 %v487, %v543
        %v552 = vmul.f32 %v488, %v544
        %v553 = vmul.f32 %v489, %v545
        %v554 = vmul.f32 %v490, %v546
        %v555 = vmul.f32 %v491, %v547
        %v556 = vmul.f32 %v492, %v548
        %v557 = vmul.f32 %v493, %v549
        %v558 = vmul.f32 %v494, %v550
        %v559 = vlaneseq
        %v560 = vshrl.u32 %v559, 7
        %v561 = vsub.s32 1, %v560
        %v562 = vrot.slane %v308, %v561
        %v563 = vmul.f32 %v551, %v562
        %v564 = vmul.f32 %v552, %v562
        %v565 = vmul.f32 %v553, %v562
        %v566 = vmul.f32 %v554, %v562
        %v567 = vmul.f32 %v555, %v562
        %v568 = vmul.f32 %v556, %v562
        %v569 = vmul.f32 %v557, %v562
        %v570 = vmul.f32 %v558, %v562
        %v571 = vlaneseq
        %v572 = vshrl.u32 %v571, 7
        %v573 = vsub.s32 2, %v572
        %v574 = vrot.slane %v308, %v573
        %v575 = vadd.f32 %v563, %v574
        %v576 = vadd.f32 %v564, %v574
        %v577 = vadd.f32 %v565, %v574
        %v578 = vadd.f32 %v566, %v574
        %v579 = vadd.f32 %v567, %v574
        %v580 = vadd.f32 %v568, %v574
        %v581 = vadd.f32 %v569, %v574
        %v582 = vadd.f32 %v570, %v574
        %v583 = vld [vmem:[%s273] sm:$0xff]
        %v584 = vld [vmem:[%s273 + $0x8] sm:$0xff]
        %v585 = vld [vmem:[%s273 + $0x10] sm:$0xff]
        %v586 = vld [vmem:[%s273 + $0x18] sm:$0xff]
        %v587 = vld [vmem:[%s3] sm:$0xff]
        %v588 = vld [vmem:[%s3 + $0x8] sm:$0xff]
        %v589 = vlaneseq
        %v590 = vshrl.u32 %v589, 7
        %v591 = vsub.s32 3, %v590
        %v592 = vrot.slane %v308, %v591
        %v594 = vsel %vm323, %v583, 0
        %v597 = vsel %vm323, %v584, 0
        %v600 = vsel %vm323, %v585, 0
        %v603 = vsel %vm323, %v586, 0
        %605 = vmatprep.subr.mxu0 0.0
        %606 = vmatpush1.msra.mxu0 %v587
        %607 = vmatprep.subr.mxu0 0.0
        %608 = vmatpush1.msra.mxu0 %v588
        %609 = vmatprep.subr.mxu0 0.0
        %610 = vmatpush1.msra.mxu0 0.0
        %611 = vmatprep.subr.mxu0 0.0
        %612 = vmatpush1.msra.mxu0 0.0
        %613 = vmatprep.subr.mxu0 0.0
        %614 = vmatpush1.msra.mxu0 0.0
        %615 = vmatprep.subr.mxu0 0.0
        %616 = vmatpush1.msra.mxu0 0.0
        %617 = vmatprep.subr.mxu0 0.0
        %618 = vmatpush1.msra.mxu0 0.0
        %619 = vmatprep.subr.mxu0 0.0
        %620 = vmatpush1.msra.mxu0 0.0
        %621 = vmatprep.subr.mxu0 0.0
        %622 = vmatpush1.msra.mxu0 0.0
        %623 = vmatprep.subr.mxu0 0.0
        %624 = vmatpush1.msra.mxu0 0.0
        %625 = vmatprep.subr.mxu0 0.0
        %626 = vmatpush1.msra.mxu0 0.0
        %627 = vmatprep.subr.mxu0 0.0
        %628 = vmatpush1.msra.mxu0 0.0
        %629 = vmatprep.subr.mxu0 0.0
        %630 = vmatpush1.msra.mxu0 0.0
        %631 = vmatprep.subr.mxu0 0.0
        %632 = vmatpush1.msra.mxu0 0.0
        %633 = vmatprep.subr.mxu0 0.0
        %634 = vmatpush1.msra.mxu0 0.0
        %635 = vmatprep.subr.mxu0 0.0
        %636 = vmatpush1.msra.mxu0 0.0
        %637 = vmatprep.subr.mxu0 0.0
        %638 = vmatpush1.msra.mxu0 0.0
        %639 = vmatprep.subr.mxu0 0.0
        %640 = vmatpush1.msra.mxu0 0.0
        %641 = vmatprep.subr.mxu0 0.0
        %642 = vmatpush1.msra.mxu0 0.0
        %643 = vmatprep.subr.mxu0 0.0
        %644 = vmatpush1.msra.mxu0 0.0
        %645 = vmatprep.subr.mxu0 0.0
        %646 = vmatpush1.msra.mxu0 0.0
        %647 = vmatprep.subr.mxu0 0.0
        %648 = vmatpush1.msra.mxu0 0.0
        %649 = vmatprep.subr.mxu0 0.0
        %650 = vmatpush1.msra.mxu0 0.0
        %651 = vmatprep.subr.mxu0 0.0
        %652 = vmatpush1.msra.mxu0 0.0
        %653 = vmatprep.subr.mxu0 0.0
        %654 = vmatpush1.msra.mxu0 0.0
        %655 = vmatprep.subr.mxu0 0.0
        %656 = vmatpush1.msra.mxu0 0.0
        %657 = vmatprep.subr.mxu0 0.0
        %658 = vmatpush1.msra.mxu0 0.0
        %659 = vmatprep.subr.mxu0 0.0
        %660 = vmatpush1.msra.mxu0 0.0
        %661 = vmatprep.subr.mxu0 0.0
        %662 = vmatpush1.msra.mxu0 0.0
        %663 = vmatprep.subr.mxu0 0.0
        %664 = vmatpush1.msra.mxu0 0.0
        %665 = vmatprep.subr.mxu0 0.0
        %666 = vmatpush1.msra.mxu0 0.0
        %667 = vmatprep.subr.mxu0 0.0
        %668 = vmatpush1.msra.mxu0 0.0
        %669 = vmatprep.mubr.f32.mxu0 0.0
        %670 = vmatmul.mubr.f32.gmra.mrb[0].mxu0 %v594
        %v671 = vpop.f32.mrb[0].mxu0
        %v672 = vadd.f32 %v592, %v671
        %v673 = vpop.f32.mrb[0].mxu0
        %674 = vmatprep.mubr.f32.mxu0 0.0
        %675 = vmatmul.mubr.f32.gmra.mrb[0].mxu0 %v597
        %v676 = vpop.f32.mrb[0].mxu0
        %v677 = vadd.f32 %v592, %v676
        %v678 = vpop.f32.mrb[0].mxu0
        %679 = vmatprep.mubr.f32.mxu0 0.0
        %680 = vmatmul.mubr.f32.gmra.mrb[0].mxu0 %v600
        %v681 = vpop.f32.mrb[0].mxu0
        %v682 = vadd.f32 %v592, %v681
        %v683 = vpop.f32.mrb[0].mxu0
        %684 = vmatprep.mubr.f32.mxu0 0.0
        %685 = vmatmul.mubr.f32.gmra.mrb[0].mxu0 %v603
        %v686 = vpop.f32.mrb[0].mxu0
        %v687 = vadd.f32 %v592, %v686
        %v688 = vpop.f32.mrb[0].mxu0
        %689 = vdwg.mxu0
        %v690 = vsel %vm453, %v672, 0.0
        %691 = vadd.xlane.f32.xlu0 %v690
        %v692 = vpop.xlane.xlu0 %691
        %v693 = vsel %vm453, %v677, 0.0
        %694 = vadd.xlane.f32.xlu0 %v693
        %v695 = vpop.xlane.xlu0 %694
        %v696 = vsel %vm453, %v682, 0.0
        %697 = vadd.xlane.f32.xlu0 %v696
        %v698 = vpop.xlane.xlu0 %697
        %v699 = vsel %vm453, %v687, 0.0
        %700 = vadd.xlane.f32.xlu0 %v699
        %v701 = vpop.xlane.xlu0 %700
        %v702 = vmul.f32 %v692, %v478
        %v703 = vmul.f32 %v695, %v478
        %v704 = vmul.f32 %v698, %v478
        %v705 = vmul.f32 %v701, %v478
        %v706 = vsub.f32 %v672, %v702
        %v707 = vsub.f32 %v677, %v703
        %v708 = vsub.f32 %v682, %v704
        %v709 = vsub.f32 %v687, %v705
        %v710 = vmul.f32 %v706, %v706
        %v711 = vmul.f32 %v707, %v707
        %v712 = vmul.f32 %v708, %v708
        %v713 = vmul.f32 %v709, %v709
        %v714 = vsel %vm453, %v710, 0.0
        %715 = vadd.xlane.f32.xlu0 %v714
        %v716 = vpop.xlane.xlu0 %715
        %v717 = vsel %vm453, %v711, 0.0
        %718 = vadd.xlane.f32.xlu0 %v717
        %v719 = vpop.xlane.xlu0 %718
        %v720 = vsel %vm453, %v712, 0.0
        %721 = vadd.xlane.f32.xlu0 %v720
        %v722 = vpop.xlane.xlu0 %721
        %v723 = vsel %vm453, %v713, 0.0
        %724 = vadd.xlane.f32.xlu0 %v723
        %v725 = vpop.xlane.xlu0 %724
        %v726 = vmul.f32 %v716, %v478
        %v727 = vmul.f32 %v719, %v478
        %v728 = vmul.f32 %v722, %v478
        %v729 = vmul.f32 %v725, %v478
        %v730 = vadd.f32 %v726, 1e-06
        %v731 = vadd.f32 %v727, 1e-06
        %v732 = vadd.f32 %v728, 1e-06
        %v733 = vadd.f32 %v729, 1e-06
        %v734 = vrsqrt.pop %v730
        %v735 = vrsqrt.pop %v731
        %v736 = vrsqrt.pop %v732
        %v737 = vrsqrt.pop %v733
        %v738 = vmul.f32 %v706, %v734
        %v739 = vmul.f32 %v707, %v735
        %v740 = vmul.f32 %v708, %v736
        %v741 = vmul.f32 %v709, %v737
        %v742 = vlaneseq
        %v743 = vshrl.u32 %v742, 7
        %v744 = vsub.s32 4, %v743
        %v745 = vrot.slane %v308, %v744
        %v746 = vmul.f32 %v738, %v745
        %v747 = vmul.f32 %v739, %v745
        %v748 = vmul.f32 %v740, %v745
        %v749 = vmul.f32 %v741, %v745
        %v750 = vlaneseq
        %v751 = vshrl.u32 %v750, 7
        %v752 = vsub.s32 5, %v751
        %v753 = vrot.slane %v308, %v752
        %v754 = vadd.f32 %v746, %v753
        %v755 = vadd.f32 %v747, %v753
        %v756 = vadd.f32 %v748, %v753
        %v757 = vadd.f32 %v749, %v753
        %v758 = vadd.f32 %v575, %v754
        %v759 = vadd.f32 %v576, %v754
        %v760 = vadd.f32 %v577, %v755
        %v761 = vadd.f32 %v578, %v755
        %v762 = vadd.f32 %v579, %v756
        %v763 = vadd.f32 %v580, %v756
        %v764 = vadd.f32 %v581, %v757
        %v765 = vadd.f32 %v582, %v757
        %766 = vst.msk [vmem:[%s304] sm:$0xff] %vm453, %v758
        %767 = vst.msk [vmem:[%s304 + $0x8] sm:$0xff] %vm453, %v759
        %768 = vst.msk [vmem:[%s304 + $0x10] sm:$0xff] %vm453, %v760
        %769 = vst.msk [vmem:[%s304 + $0x18] sm:$0xff] %vm453, %v761
        %770 = vst.msk [vmem:[%s304 + $0x20] sm:$0xff] %vm453, %v762
        %771 = vst.msk [vmem:[%s304 + $0x28] sm:$0xff] %vm453, %v763
        %772 = vst.msk [vmem:[%s304 + $0x30] sm:$0xff] %vm453, %v764
        %773 = vst.msk [vmem:[%s304 + $0x38] sm:$0xff] %vm453, %v765
        %s774 = sand.u32 %s166, 1
        %s775 = scalar_lea.sflag [#allocation4], %s774
        %s776 = sand.u32 %s166, 1
        %s777 = smul.addr %s776, 64
        %s778 = scalar_lea.vmem [#allocation7], %s777
        // Predicated region
        $region49: #{tpu_custom_call.1} parent=39 // pred_check
          %p779 = pneg %p176
        $region50: #{tpu_custom_call.1} parent=39 // pred_check_branch
          %781 = sbr.rel (%p779) target = $region52
        $region51: #{tpu_custom_call.1} parent=39 // pred_region
          %s782 = smul.u32 8, %s30
          %s784 = ssub.s32 1024, 1024
          %785 = vsyncadd %s775, %s784
          %s786 = smul.addr %s29, 8
          %s787 = sadd.s32 %s782, %s786
          %s788 = smul.addr %s787, 128
          %s789 = scalar_lea.hbm %s5, %s788
          %s790 = sshll.u32 %s778, 4
          %s791 = int_to_ptr.vmem [resolvable:$true] %s790
          %796 = dma.vmem_to_hbm [thread:$0]  %s791, 1024, %s789, %s775, 128, 128, 8
        $region52: #{tpu_custom_call.1} parent=39 // pred_fallthru
          _
      $region40: #{tpu_custom_call.1} parent=5 // pred_fallthru
        _
      %p797 = scmp.le.s32.totalorder 2, %s20
      // Predicated region
      $region53: #{tpu_custom_call.1} parent=5 // pred_check
        %p798 = pneg %p797
      $region54: #{tpu_custom_call.1} parent=5 // pred_check_branch
        %800 = sbr.rel (%p798) target = $region56
      $region55: #{tpu_custom_call.1} parent=5 // pred_region
        %s801 = ssub.s32 %s20, 2
        // Predicated region
        $region57: #{tpu_custom_call.1} parent=55 // pred_check
          %p802 = pneg %p182
        $region58: #{tpu_custom_call.1} parent=55 // pred_check_branch
          %804 = sbr.rel (%p802) target = $region60
        $region59: #{tpu_custom_call.1} parent=55 // pred_region
          %s805 = sand.u32 %s167, 1
          %s806 = scalar_lea.sflag [#allocation4], %s805
          %s807 = sand.u32 %s167, 1
          %s808 = smul.addr %s807, 64
          %s809 = scalar_lea.vmem [#allocation7], %s808
          %810 = dma.done %s806, 1024
        $region60: #{tpu_custom_call.1} parent=55 // pred_fallthru
          _
      $region56: #{tpu_custom_call.1} parent=5 // pred_fallthru
        _
    $region6: #{tpu_custom_call.1} parent=1 // loop_footer
      %s24 = sadd.s32 1, %s20
    $region7: #{tpu_custom_call.1} parent=1 // loop_footer_branch
      %19 = sbr.rel target = $region3
    $region8: #{tpu_custom_call.1} parent=1 // loop_exit
      _
    %811 = vsyncpa [#allocation3], 1
    %s812 = scalar_lea.sflag [#allocation3], 1
    %813 = vsyncpa %s812, 1
    %814 = vsyncpa [#allocation6], 1
    %s815 = scalar_lea.sflag [#allocation6], 1
    %816 = vsyncpa %s815, 1
    %817 = vsyncpa [#allocation4], 1
    %s818 = scalar_lea.sflag [#allocation4], 1
    %819 = vsyncpa %s818, 1

</llo_original>
